<compile_context>
chip_gen: v6e
topology: v6e:2x2x1
jax: 0.10.0
libtpu: 0.0.40
codegen_flags: <defaults>
</compile_context>

<pallas_src>
import functools

import jax
import jax.numpy as jnp
import numpy as np
from jax.experimental import pallas as pl
from jax.experimental.pallas import tpu as pltpu

CATE_DIM = 32
RNN_HIDDEN_DIM = 64   # fixed by the module (fc11 / fc1q output width)
OUT_PAD = 128         # lane-dense output width (sliced to n_out outside)
TILE_T = 256          # samples per grid step (mult. of 128 for v5e, 256 for v6e/v7x)


def _round_up(x, m):
    return (x + m - 1) // m * m


# ----------------------------------------------------------------------------
# Kernels
# ----------------------------------------------------------------------------
def _gas_forward_kernel(x_ref, oth_ref, s128_ref, s64_ref, s32_ref, q_ref, *,
                        D, OD, n_others, off128, off64, off32):
    """use_test=False forward for one (TILE_T, .) tile of samples."""
    H, C = RNN_HIDDEN_DIM, CATE_DIM

    # --- unpack packed weight slabs (static slices; VMEM-resident) -----------
    w1 = s128_ref[pl.ds(off128[0], D), :]            # (D,128)  = [w11 | w1q]
    w3p = s128_ref[pl.ds(off128[1], H), :]           # (64,128) = [w3 | 0]
    b1 = s128_ref[pl.ds(off128[2], 1), :]            # (1,128)  = [b11 | b1q]
    b3p = s128_ref[pl.ds(off128[3], 1), :]           # (1,128)  = [b3 | 0]
    wq_row = s128_ref[pl.ds(off128[4], 1), pl.ds(0, H)]   # (1,64) attn wrt input_q
    we_row = s128_ref[pl.ds(off128[5], 1), pl.ds(0, C)]   # (1,32) attn wrt emb
    bat = s128_ref[pl.ds(off128[6], 1), pl.ds(0, 1)]      # (1,1)

    w2a = s64_ref[pl.ds(off64[0], H), :]              # (64,64)
    w2b = s64_ref[pl.ds(off64[1], C), :]              # (32,64)
    b2 = s64_ref[pl.ds(off64[2], 1), :]               # (1,64)

    w12 = s32_ref[pl.ds(off32[0], OD), :]             # (OD,32)
    wao = s32_ref[pl.ds(off32[1], C), :]              # (32,32)
    b12 = s32_ref[pl.ds(off32[2], 1), :]              # (1,32)
    bao = s32_ref[pl.ds(off32[3], 1), :]              # (1,32)

    x = x_ref[...]                                    # (T, D)

    # --- fc11 / fc1q fused: single (T,D)@(D,128) MXU push ---------------------
    h1 = jnp.dot(x, w1, preferred_element_type=jnp.float32) + b1   # (T,128)
    input_x = h1[:, :H]                                            # (T,64)
    input_q = h1[:, H:]                                            # (T,64)
    relu_q = jnp.maximum(input_q, 0.0)
    # attn(relu(cat(input_q, emb_i))) = relu(input_q)@Wq + relu(emb_i)@We + b
    # query part is agent-independent -> compute once (VPU mul + lane reduce).
    q_score = jnp.sum(relu_q * wq_row, axis=-1, keepdims=True) + bat  # (T,1)

    # --- fc12 + attention scores, statically unrolled over the other agents ---
    embs_v, atts = [], []
    for i in range(n_others):
        emb = jnp.dot(oth_ref[i], w12,
                      preferred_element_type=jnp.float32) + b12       # (T,32)
        emb_v = jnp.maximum(emb, 0.0)
        att = q_score + jnp.sum(emb_v * we_row, axis=-1, keepdims=True)
        embs_v.append(emb_v)
        atts.append(att)

    # softmax over agents (elementwise across the n_others (T,1) arrays)
    m = atts[0]
    for i in range(1, n_others):
        m = jnp.maximum(m, atts[i])
    z = jnp.zeros_like(m)
    mix = jnp.zeros_like(embs_v[0])
    for i in range(n_others):
        e = jnp.exp(atts[i] - m)
        z = z + e
        mix = mix + e * embs_v[i]
    mix = mix / z                                                     # (T,32)
    io = jnp.dot(jnp.maximum(mix, 0.0), wao,
                 preferred_element_type=jnp.float32) + bao            # (T,32)

    # --- hard one-hot of argmax(softmax(io)) == argmax(io) (softmax monotone) -
    lane = jax.lax.broadcasted_iota(jnp.int32, io.shape, 1)
    mx = jnp.max(io, axis=-1, keepdims=True)
    first = jnp.min(jnp.where(io >= mx, lane, C), axis=-1, keepdims=True)
    one_hot = (lane == first).astype(jnp.float32)                     # (T,32)

    # --- relu(cat(input_x, one_hot)) -> fc2 -> relu -> fc3 (lane-dense store) -
    a = jnp.maximum(input_x, 0.0)
    pre = (jnp.dot(a, w2a, preferred_element_type=jnp.float32)
           + jnp.dot(one_hot, w2b, preferred_element_type=jnp.float32)
           + b2)                                                      # (T,64)
    h = jnp.maximum(pre, 0.0)
    q_ref[...] = (jnp.dot(h, w3p, preferred_element_type=jnp.float32)
                  + b3p).astype(q_ref.dtype)                          # (T,128)


def _gas_test_kernel(idx_ref, x_ref, s128_ref, s64_ref, q_ref, *,
                     D, off128, off64):
    """use_test=True path: evaluate all 32 one-hot codes, output the winner."""
    H, C = RNN_HIDDEN_DIM, CATE_DIM
    w1 = s128_ref[pl.ds(off128[0], D), :]
    w3p = s128_ref[pl.ds(off128[1], H), :]
    b1 = s128_ref[pl.ds(off128[2], 1), :]
    b3p = s128_ref[pl.ds(off128[3], 1), :]
    w2a = s64_ref[pl.ds(off64[0], H), :]
    w2b = s64_ref[pl.ds(off64[1], C), :]
    b2 = s64_ref[pl.ds(off64[2], 1), :]

    h1 = jnp.dot(x_ref[...], w1, preferred_element_type=jnp.float32) + b1  # (1,128)
    a = jnp.maximum(h1[:, :H], 0.0)                                        # (1,64)
    # relu(cat(input_x, e_i)) @ W2 == a @ W2a + W2b[i] + b2 -- all 32 rows at once
    pre = jnp.dot(a, w2a, preferred_element_type=jnp.float32) + w2b + b2   # (32,64)
    h = jnp.maximum(pre, 0.0)
    q_all = jnp.dot(h, w3p, preferred_element_type=jnp.float32) + b3p      # (32,128)

    # fused selection: first maximizer of column act_idx (matches strict '>' loop)
    act_idx = idx_ref[0]
    lane = jax.lax.broadcasted_iota(jnp.int32, q_all.shape, 1)
    col = jnp.sum(jnp.where(lane == act_idx, q_all, 0.0),
                  axis=-1, keepdims=True)                                  # (32,1)
    sub = jax.lax.broadcasted_iota(jnp.int32, (C, 1), 0)
    best = jnp.min(jnp.where(col >= jnp.max(col, axis=0, keepdims=True), sub, C),
                   axis=0, keepdims=True)                                  # (1,1)
    sel = jax.lax.broadcasted_iota(jnp.int32, q_all.shape, 0) == best
    q_ref[...] = jnp.sum(jnp.where(sel, q_all, 0.0),
                         axis=0, keepdims=True).astype(q_ref.dtype)        # (1,128)


# ----------------------------------------------------------------------------
# Wrappers
# ----------------------------------------------------------------------------
def _forward_call(packed, meta, x_b, oth_b, tile_t):
    """x_b: (T_pad, D), oth_b: (n_others, T_pad, OD) -> (T_pad, OUT_PAD)."""
    T = x_b.shape[0]
    D, OD = meta["D"], meta["OD"]
    n_others = oth_b.shape[0]
    s128, s64, s32 = packed["slab128"], packed["slab64"], packed["slab32"]

    kernel = functools.partial(
        _gas_forward_kernel, D=D, OD=OD, n_others=n_others,
        off128=meta["off128"], off64=meta["off64"], off32=meta["off32"])

    return pl.pallas_call(
        kernel,
        out_shape=jax.ShapeDtypeStruct((T, OUT_PAD), jnp.float32),
        grid=(T // tile_t,),
        in_specs=[
            pl.BlockSpec((tile_t, D), lambda t: (t, 0)),
            pl.BlockSpec((n_others, tile_t, OD), lambda t: (0, t, 0)),
            # weights: constant block index -> stay VMEM-resident across grid
            pl.BlockSpec(s128.shape, lambda t: (0, 0)),
            pl.BlockSpec(s64.shape, lambda t: (0, 0)),
            pl.BlockSpec(s32.shape, lambda t: (0, 0)),
        ],
        out_specs=pl.BlockSpec((tile_t, OUT_PAD), lambda t: (t, 0)),
        compiler_params=pltpu.CompilerParams(
            dimension_semantics=("parallel",)),
    )(x_b, oth_b, s128, s64, s32)


def mlp_gas_forward_batch(packed, meta, inputs_batch, other_batch,
                          tile_t=TILE_T):
    """use_test=False, many samples amortized over one pallas_call grid.

    inputs_batch: (T, D), other_batch: (T, n_others, OD) -> (T, n_out).
    """
    T = inputs_batch.shape[0]
    n_out = meta["n_out"]
    tile = min(tile_t, _round_up(T, 8))
    T_pad = _round_up(T, tile)

    x = inputs_batch.astype(jnp.float32)
    oth = jnp.transpose(other_batch.astype(jnp.float32), (1, 0, 2))  # (n_others,T,OD)
    if T_pad != T:
        x = jnp.pad(x, ((0, T_pad - T), (0, 0)))
        oth = jnp.pad(oth, ((0, 0), (0, T_pad - T), (0, 0)))

    q = _forward_call(packed, meta, x, oth, tile)
    return q[:T, :n_out]


def mlp_gas_forward(packed, meta, inputs, other_inputs):
    """use_test=False, single sample. inputs: (D,), other_inputs: (n_others, OD).

    Note: single-sample calls are dispatch-bound; batch at the caller when possible.
    """
    q = mlp_gas_forward_batch(packed, meta, inputs[None, :], other_inputs[None, ...])
    return q[0]


def mlp_gas_forward_test(packed, meta, inputs, act_idx):
    """use_test=True: q of the best one-hot code for act_idx, plus var=0."""
    x = inputs.reshape(1, -1).astype(jnp.float32)
    D, n_out = meta["D"], meta["n_out"]
    kernel = functools.partial(_gas_test_kernel, D=D,
                               off128=meta["off128"], off64=meta["off64"])
    vmem = pl.BlockSpec(memory_space=pltpu.MemorySpace.VMEM)
    smem = pl.BlockSpec(memory_space=pltpu.MemorySpace.SMEM)
    idx_arr = jnp.asarray([act_idx], dtype=jnp.int32)
    q = pl.pallas_call(
        kernel,
        out_shape=jax.ShapeDtypeStruct((1, OUT_PAD), jnp.float32),
        in_specs=[smem, vmem, vmem, vmem],
        out_specs=vmem,
    )(idx_arr, x, packed["slab128"], packed["slab64"])
    var = 0  # as in the module
    return q[0, :n_out], var


# ----------------------------------------------------------------------------
# Parameter init / packing
# ----------------------------------------------------------------------------
def _pack_rows(blocks, width):
    """Concat row-blocks into a `width`-lane slab; each block 8-sublane aligned."""
    parts, offs, cur = [], [], 0
    for b in blocks:
        b = jnp.asarray(b, jnp.float32)
        r, c = b.shape
        if c < width:
            b = jnp.pad(b, ((0, 0), (0, width - c)))
        offs.append(cur)
        parts.append(b)
        pad = (-r) % 8
        if pad:
            parts.append(jnp.zeros((pad, width), jnp.float32))
        cur += r + pad
    return jnp.concatenate(parts, axis=0), tuple(offs)


def init_params(key, input_dim, other_dim, n_out):
    """PyTorch-style uniform(+-1/sqrt(fan_in)) init; weights stored (in, out)."""
    assert n_out <= OUT_PAD
    ks = jax.random.split(key, 14)

    def lin(kw, kb, fan_in, fan_out):
        bound = 1.0 / np.sqrt(fan_in)
        w = jax.random.uniform(kw, (fan_in, fan_out), jnp.float32, -bound, bound)
        b = jax.random.uniform(kb, (1, fan_out), jnp.float32, -bound, bound)
        return w, b

    w11, b11 = lin(ks[0], ks[1], input_dim, RNN_HIDDEN_DIM)
    w12, b12 = lin(ks[2], ks[3], other_dim, CATE_DIM)
    w1q, b1q = lin(ks[4], ks[5], input_dim, RNN_HIDDEN_DIM)
    wat, bat = lin(ks[6], ks[7], RNN_HIDDEN_DIM + CATE_DIM, 1)
    wao, bao = lin(ks[8], ks[9], CATE_DIM, CATE_DIM)
    w2, b2 = lin(ks[10], ks[11], RNN_HIDDEN_DIM + CATE_DIM, RNN_HIDDEN_DIM)
    w3, b3 = lin(ks[12], ks[13], RNN_HIDDEN_DIM, n_out)

    # lane-dense packing
    w1 = jnp.concatenate([w11, w1q], axis=1)                    # (D,128)
    b1 = jnp.concatenate([b11, b1q], axis=1)                    # (1,128)
    w3p = jnp.pad(w3, ((0, 0), (0, OUT_PAD - n_out)))           # (64,128)
    b3p = jnp.pad(b3, ((0, 0), (0, OUT_PAD - n_out)))           # (1,128)
    wq_row = wat[:RNN_HIDDEN_DIM].T                             # (1,64)
    we_row = wat[RNN_HIDDEN_DIM:].T                             # (1,32)

    slab128, off128 = _pack_rows([w1, w3p, b1, b3p, wq_row, we_row, bat], 128)
    slab64, off64 = _pack_rows([w2[:RNN_HIDDEN_DIM], w2[RNN_HIDDEN_DIM:], b2], 64)
    slab32, off32 = _pack_rows([w12, wao, b12, bao], 32)

    packed = dict(slab128=slab128, slab64=slab64, slab32=slab32)
    meta = dict(D=input_dim, OD=other_dim, n_out=n_out,
                off128=off128, off64=off64, off32=off32)
    raw = dict(w11=w11, b11=b11, w12=w12, b12=b12, w1q=w1q, b1q=b1q,
               wat=wat, bat=bat, wao=wao, bao=bao, w2=w2, b2=b2, w3=w3, b3=b3)
    return packed, meta, raw


# ----------------------------------------------------------------------------
# Pure-JAX references (mirror the torch forward exactly)
# ----------------------------------------------------------------------------
def _reference_forward(raw, inputs, other_inputs):
    """Returns (q, io_logits) -- io_logits exposed for tie-aware batch checks."""
    input_x = inputs @ raw["w11"] + raw["b11"][0]
    input_q = inputs @ raw["w1q"] + raw["b1q"][0]
    emb = other_inputs @ raw["w12"] + raw["b12"][0]
    emb_v = jnp.maximum(emb, 0.0)
    n_others = other_inputs.shape[0]
    cat_q = jnp.concatenate(
        [jnp.broadcast_to(input_q, (n_others, RNN_HIDDEN_DIM)), emb], axis=1)
    w = jnp.maximum(cat_q, 0.0) @ raw["wat"] + raw["bat"][0]
    nw = jax.nn.softmax(w, axis=0)
    mix = nw.reshape(1, -1) @ emb_v
    io = jnp.maximum(mix, 0.0) @ raw["wao"] + raw["bao"][0]
    z_prob = jax.nn.softmax(io.reshape(-1))
    one_hot = jax.nn.one_hot(jnp.argmax(z_prob), CATE_DIM, dtype=jnp.float32)
    xcat = jnp.maximum(jnp.concatenate([input_x, one_hot]), 0.0)
    h = jnp.maximum(xcat @ raw["w2"] + raw["b2"][0], 0.0)
    return h @ raw["w3"] + raw["b3"][0], io.reshape(-1)


def _reference_forward_test(raw, inputs, act_idx):
    input_x = inputs @ raw["w11"] + raw["b11"][0]
    eye = jnp.eye(CATE_DIM, dtype=jnp.float32)
    xcat = jnp.concatenate(
        [jnp.broadcast_to(input_x, (CATE_DIM, RNN_HIDDEN_DIM)), eye], axis=1)
    h = jnp.maximum(jnp.maximum(xcat, 0.0) @ raw["w2"] + raw["b2"][0], 0.0)
    q_all = h @ raw["w3"] + raw["b3"][0]
    best = jnp.argmax(q_all[:, act_idx])
    return q_all[best], 0


# ----------------------------------------------------------------------------
if __name__ == "__main__":
    input_dim = 40      # input_shape[0]
    other_dim = 24      # input_shape[1]
    n_agents = 4        # -> n_others = 3
    n_out = 8           # output_shape (number of actions)
    n_others = n_agents - 1

    key = jax.random.PRNGKey(0)
    k_par, k_in, k_oth, k_binp, k_both = jax.random.split(key, 5)
    packed, meta, raw = init_params(k_par, input_dim, other_dim, n_out)

    inputs = jax.random.normal(k_in, (input_dim,), jnp.float32)
    other_inputs = jax.random.normal(k_oth, (n_others, other_dim), jnp.float32)

    # use_test=False path (single sample; goes through the batched kernel, T=1)
    q = jax.block_until_ready(mlp_gas_forward(packed, meta, inputs, other_inputs))
    q_ref, _ = _reference_forward(raw, inputs, other_inputs)
    assert np.allclose(np.asarray(q), np.asarray(q_ref), rtol=1e-3, atol=1e-3)

    # batched path: 512 samples -> 2 grid tiles of 256 (feeds both v7x TCs)
    T = 512
    inputs_b = jax.random.normal(k_binp, (T, input_dim), jnp.float32)
    other_b = jax.random.normal(k_both, (T, n_others, other_dim), jnp.float32)
    q_b = jax.block_until_ready(mlp_gas_forward_batch(packed, meta, inputs_b, other_b))
    q_b_ref, io_ref = jax.vmap(lambda xi, oi: _reference_forward(raw, xi, oi))(
        inputs_b, other_b)
    q_b_np, q_b_ref_np = np.asarray(q_b), np.asarray(q_b_ref)
    close = np.all(np.abs(q_b_np - q_b_ref_np)
                   <= 1e-3 + 1e-3 * np.abs(q_b_ref_np), axis=-1)
    # tolerate samples whose top-2 category logits are numerically tied
    io_sorted = np.sort(np.asarray(io_ref), axis=-1)
    tied = (io_sorted[:, -1] - io_sorted[:, -2]) < 1e-4
    assert np.all(close | tied)

    # use_test=True path (fused 32-code evaluation + argmax selection)
    q_t, var = mlp_gas_forward_test(packed, meta, inputs, act_idx=3)
    q_t = jax.block_until_ready(q_t)
    q_t_ref, _ = _reference_forward_test(raw, inputs, act_idx=3)
    assert np.allclose(np.asarray(q_t), np.asarray(q_t_ref), rtol=1e-3, atol=1e-3)
    assert var == 0

    print("KERNEL_OK")
</pallas_src>

<mosaic_0001>
module attributes {stable_mosaic.version = 11 : i64} {
  func.func @_gas_forward_kernel(%arg0: i32, %arg1: memref<8x40xf32, #tpu.memory_space<vmem>>, %arg2: memref<3x8x24xf32, #tpu.memory_space<vmem>>, %arg3: memref<144x128xf32, #tpu.memory_space<vmem>>, %arg4: memref<104x64xf32, #tpu.memory_space<vmem>>, %arg5: memref<72x32xf32, #tpu.memory_space<vmem>>, %arg6: memref<8x128xf32, #tpu.memory_space<vmem>>) attributes {dimension_semantics = [#tpu.dimension_semantics<parallel>], iteration_bounds = array<i64: 1>, scalar_prefetch = 0 : i64, scratch_operands = 0 : i64, tpu.core_type = #tpu.core_type<tc>, window_params = [{transform_indices = @transform_0, window_bounds = array<i64: 8, 40>}, {transform_indices = @transform_1, window_bounds = array<i64: 3, 8, 24>}, {pipeline_mode = #tpu.pipeline_mode<synchronous>, transform_indices = @transform_2, window_bounds = array<i64: 144, 128>}, {pipeline_mode = #tpu.pipeline_mode<synchronous>, transform_indices = @transform_3, window_bounds = array<i64: 104, 64>}, {pipeline_mode = #tpu.pipeline_mode<synchronous>, transform_indices = @transform_4, window_bounds = array<i64: 72, 32>}, {transform_indices = @transform_5, window_bounds = array<i64: 8, 128>}]} {
    %c0 = arith.constant 0 : index
    %c0_0 = arith.constant 0 : index
    %0 = vector.load %arg3[%c0, %c0_0] : memref<144x128xf32, #tpu.memory_space<vmem>>, vector<40x128xf32>
    %c40 = arith.constant 40 : index
    %c0_1 = arith.constant 0 : index
    %1 = vector.load %arg3[%c40, %c0_1] : memref<144x128xf32, #tpu.memory_space<vmem>>, vector<64x128xf32>
    %c104 = arith.constant 104 : index
    %c0_2 = arith.constant 0 : index
    %2 = vector.load %arg3[%c104, %c0_2] : memref<144x128xf32, #tpu.memory_space<vmem>>, vector<1x128xf32>
    %c112 = arith.constant 112 : index
    %c0_3 = arith.constant 0 : index
    %3 = vector.load %arg3[%c112, %c0_3] : memref<144x128xf32, #tpu.memory_space<vmem>>, vector<1x128xf32>
    %c120 = arith.constant 120 : index
    %c0_4 = arith.constant 0 : index
    %4 = vector.load %arg3[%c120, %c0_4] : memref<144x128xf32, #tpu.memory_space<vmem>>, vector<1x64xf32>
    %c128 = arith.constant 128 : index
    %c0_5 = arith.constant 0 : index
    %5 = vector.load %arg3[%c128, %c0_5] : memref<144x128xf32, #tpu.memory_space<vmem>>, vector<1x32xf32>
    %c136 = arith.constant 136 : index
    %c0_6 = arith.constant 0 : index
    %6 = vector.load %arg3[%c136, %c0_6] : memref<144x128xf32, #tpu.memory_space<vmem>>, vector<1x1xf32>
    %c0_7 = arith.constant 0 : index
    %c0_8 = arith.constant 0 : index
    %7 = vector.load %arg4[%c0_7, %c0_8] : memref<104x64xf32, #tpu.memory_space<vmem>>, vector<64x64xf32>
    %c64 = arith.constant 64 : index
    %c0_9 = arith.constant 0 : index
    %8 = vector.load %arg4[%c64, %c0_9] : memref<104x64xf32, #tpu.memory_space<vmem>>, vector<32x64xf32>
    %c96 = arith.constant 96 : index
    %c0_10 = arith.constant 0 : index
    %9 = vector.load %arg4[%c96, %c0_10] : memref<104x64xf32, #tpu.memory_space<vmem>>, vector<1x64xf32>
    %c0_11 = arith.constant 0 : index
    %c0_12 = arith.constant 0 : index
    %10 = vector.load %arg5[%c0_11, %c0_12] : memref<72x32xf32, #tpu.memory_space<vmem>>, vector<24x32xf32>
    %c24 = arith.constant 24 : index
    %c0_13 = arith.constant 0 : index
    %11 = vector.load %arg5[%c24, %c0_13] : memref<72x32xf32, #tpu.memory_space<vmem>>, vector<32x32xf32>
    %c56 = arith.constant 56 : index
    %c0_14 = arith.constant 0 : index
    %12 = vector.load %arg5[%c56, %c0_14] : memref<72x32xf32, #tpu.memory_space<vmem>>, vector<1x32xf32>
    %c64_15 = arith.constant 64 : index
    %c0_16 = arith.constant 0 : index
    %13 = vector.load %arg5[%c64_15, %c0_16] : memref<72x32xf32, #tpu.memory_space<vmem>>, vector<1x32xf32>
    %c0_17 = arith.constant 0 : index
    %c0_18 = arith.constant 0 : index
    %14 = vector.load %arg1[%c0_17, %c0_18] : memref<8x40xf32, #tpu.memory_space<vmem>>, vector<8x40xf32>
    %cst = arith.constant dense<0.000000e+00> : vector<8x128xf32>
    %15 = tpu.matmul %14, %0, %cst {dimension_numbers = #tpu.dot_dimension_numbers<[1], [0], [0], [1], [0, 0, 1, 1], [], []>} : vector<8x40xf32>, vector<40x128xf32>, vector<8x128xf32> -> vector<8x128xf32>
    %16 = vector.broadcast %2 : vector<1x128xf32> to vector<8x128xf32>
    %17 = arith.addf %15, %16 : vector<8x128xf32>
    %18 = vector.extract_strided_slice %17 {offsets = [0, 0], sizes = [8, 64], strides = [1, 1]} : vector<8x128xf32> to vector<8x64xf32>
    %19 = vector.extract_strided_slice %17 {offsets = [0, 64], sizes = [8, 64], strides = [1, 1]} : vector<8x128xf32> to vector<8x64xf32>
    %cst_19 = arith.constant 0.000000e+00 : f32
    %20 = vector.broadcast %cst_19 : f32 to vector<8x64xf32>
    %21 = arith.maximumf %19, %20 : vector<8x64xf32>
    %22 = vector.broadcast %4 : vector<1x64xf32> to vector<8x64xf32>
    %23 = arith.mulf %21, %22 : vector<8x64xf32>
    %cst_20 = arith.constant dense<0.000000e+00> : vector<8xf32>
    %24 = vector.multi_reduction <add>, %23, %cst_20 [1] : vector<8x64xf32> to vector<8xf32>
    %25 = vector.shape_cast %24 : vector<8xf32> to vector<8x1xf32>
    %26 = vector.broadcast %6 : vector<1x1xf32> to vector<8x1xf32>
    %27 = arith.addf %25, %26 : vector<8x1xf32>
    %c0_21 = arith.constant 0 : index
    %c0_22 = arith.constant 0 : index
    %c0_23 = arith.constant 0 : index
    %28 = vector.load %arg2[%c0_21, %c0_22, %c0_23] : memref<3x8x24xf32, #tpu.memory_space<vmem>>, vector<1x8x24xf32>
    %29 = vector.shape_cast %28 : vector<1x8x24xf32> to vector<8x24xf32>
    %cst_24 = arith.constant dense<0.000000e+00> : vector<8x32xf32>
    %30 = tpu.matmul %29, %10, %cst_24 {dimension_numbers = #tpu.dot_dimension_numbers<[1], [0], [0], [1], [0, 0, 1, 1], [], []>} : vector<8x24xf32>, vector<24x32xf32>, vector<8x32xf32> -> vector<8x32xf32>
    %31 = vector.broadcast %12 : vector<1x32xf32> to vector<8x32xf32>
    %32 = arith.addf %30, %31 : vector<8x32xf32>
    %cst_25 = arith.constant 0.000000e+00 : f32
    %33 = vector.broadcast %cst_25 : f32 to vector<8x32xf32>
    %34 = arith.maximumf %32, %33 : vector<8x32xf32>
    %35 = vector.broadcast %5 : vector<1x32xf32> to vector<8x32xf32>
    %36 = arith.mulf %34, %35 : vector<8x32xf32>
    %cst_26 = arith.constant dense<0.000000e+00> : vector<8xf32>
    %37 = vector.multi_reduction <add>, %36, %cst_26 [1] : vector<8x32xf32> to vector<8xf32>
    %38 = vector.shape_cast %37 : vector<8xf32> to vector<8x1xf32>
    %39 = arith.addf %27, %38 : vector<8x1xf32>
    %c1 = arith.constant 1 : index
    %c0_27 = arith.constant 0 : index
    %c0_28 = arith.constant 0 : index
    %40 = vector.load %arg2[%c1, %c0_27, %c0_28] : memref<3x8x24xf32, #tpu.memory_space<vmem>>, vector<1x8x24xf32>
    %41 = vector.shape_cast %40 : vector<1x8x24xf32> to vector<8x24xf32>
    %cst_29 = arith.constant dense<0.000000e+00> : vector<8x32xf32>
    %42 = tpu.matmul %41, %10, %cst_29 {dimension_numbers = #tpu.dot_dimension_numbers<[1], [0], [0], [1], [0, 0, 1, 1], [], []>} : vector<8x24xf32>, vector<24x32xf32>, vector<8x32xf32> -> vector<8x32xf32>
    %43 = vector.broadcast %12 : vector<1x32xf32> to vector<8x32xf32>
    %44 = arith.addf %42, %43 : vector<8x32xf32>
    %cst_30 = arith.constant 0.000000e+00 : f32
    %45 = vector.broadcast %cst_30 : f32 to vector<8x32xf32>
    %46 = arith.maximumf %44, %45 : vector<8x32xf32>
    %47 = vector.broadcast %5 : vector<1x32xf32> to vector<8x32xf32>
    %48 = arith.mulf %46, %47 : vector<8x32xf32>
    %cst_31 = arith.constant dense<0.000000e+00> : vector<8xf32>
    %49 = vector.multi_reduction <add>, %48, %cst_31 [1] : vector<8x32xf32> to vector<8xf32>
    %50 = vector.shape_cast %49 : vector<8xf32> to vector<8x1xf32>
    %51 = arith.addf %27, %50 : vector<8x1xf32>
    %c2 = arith.constant 2 : index
    %c0_32 = arith.constant 0 : index
    %c0_33 = arith.constant 0 : index
    %52 = vector.load %arg2[%c2, %c0_32, %c0_33] : memref<3x8x24xf32, #tpu.memory_space<vmem>>, vector<1x8x24xf32>
    %53 = vector.shape_cast %52 : vector<1x8x24xf32> to vector<8x24xf32>
    %cst_34 = arith.constant dense<0.000000e+00> : vector<8x32xf32>
    %54 = tpu.matmul %53, %10, %cst_34 {dimension_numbers = #tpu.dot_dimension_numbers<[1], [0], [0], [1], [0, 0, 1, 1], [], []>} : vector<8x24xf32>, vector<24x32xf32>, vector<8x32xf32> -> vector<8x32xf32>
    %55 = vector.broadcast %12 : vector<1x32xf32> to vector<8x32xf32>
    %56 = arith.addf %54, %55 : vector<8x32xf32>
    %cst_35 = arith.constant 0.000000e+00 : f32
    %57 = vector.broadcast %cst_35 : f32 to vector<8x32xf32>
    %58 = arith.maximumf %56, %57 : vector<8x32xf32>
    %59 = vector.broadcast %5 : vector<1x32xf32> to vector<8x32xf32>
    %60 = arith.mulf %58, %59 : vector<8x32xf32>
    %cst_36 = arith.constant dense<0.000000e+00> : vector<8xf32>
    %61 = vector.multi_reduction <add>, %60, %cst_36 [1] : vector<8x32xf32> to vector<8xf32>
    %62 = vector.shape_cast %61 : vector<8xf32> to vector<8x1xf32>
    %63 = arith.addf %27, %62 : vector<8x1xf32>
    %64 = arith.maximumf %39, %51 : vector<8x1xf32>
    %65 = arith.maximumf %64, %63 : vector<8x1xf32>
    %cst_37 = arith.constant 0.000000e+00 : f32
    %66 = vector.broadcast %cst_37 : f32 to vector<8x1xf32>
    %cst_38 = arith.constant 0.000000e+00 : f32
    %67 = vector.broadcast %cst_38 : f32 to vector<8x32xf32>
    %68 = arith.subf %39, %65 : vector<8x1xf32>
    %69 = math.exp %68 : vector<8x1xf32>
    %70 = arith.addf %66, %69 : vector<8x1xf32>
    %71 = vector.broadcast %69 : vector<8x1xf32> to vector<8x32xf32>
    %72 = arith.mulf %71, %34 : vector<8x32xf32>
    %73 = arith.addf %67, %72 : vector<8x32xf32>
    %74 = arith.subf %51, %65 : vector<8x1xf32>
    %75 = math.exp %74 : vector<8x1xf32>
    %76 = arith.addf %70, %75 : vector<8x1xf32>
    %77 = vector.broadcast %75 : vector<8x1xf32> to vector<8x32xf32>
    %78 = arith.mulf %77, %46 : vector<8x32xf32>
    %79 = arith.addf %73, %78 : vector<8x32xf32>
    %80 = arith.subf %63, %65 : vector<8x1xf32>
    %81 = math.exp %80 : vector<8x1xf32>
    %82 = arith.addf %76, %81 : vector<8x1xf32>
    %83 = vector.broadcast %81 : vector<8x1xf32> to vector<8x32xf32>
    %84 = arith.mulf %83, %58 : vector<8x32xf32>
    %85 = arith.addf %79, %84 : vector<8x32xf32>
    %86 = vector.broadcast %82 : vector<8x1xf32> to vector<8x32xf32>
    %87 = arith.divf %85, %86 : vector<8x32xf32>
    %cst_39 = arith.constant 0.000000e+00 : f32
    %88 = vector.broadcast %cst_39 : f32 to vector<8x32xf32>
    %89 = arith.maximumf %87, %88 : vector<8x32xf32>
    %cst_40 = arith.constant dense<0.000000e+00> : vector<8x32xf32>
    %90 = tpu.matmul %89, %11, %cst_40 {dimension_numbers = #tpu.dot_dimension_numbers<[1], [0], [0], [1], [0, 0, 1, 1], [], []>} : vector<8x32xf32>, vector<32x32xf32>, vector<8x32xf32> -> vector<8x32xf32>
    %91 = vector.broadcast %13 : vector<1x32xf32> to vector<8x32xf32>
    %92 = arith.addf %90, %91 : vector<8x32xf32>
    %93 = tpu.iota {dimensions = array<i32: 1>} : vector<8x32xi32>
    %cst_41 = arith.constant dense<0xFF800000> : vector<8xf32>
    %94 = vector.multi_reduction <maximumf>, %92, %cst_41 [1] : vector<8x32xf32> to vector<8xf32>
    %95 = vector.shape_cast %94 : vector<8xf32> to vector<8x1xf32>
    %96 = vector.broadcast %95 : vector<8x1xf32> to vector<8x32xf32>
    %97 = arith.cmpf oge, %92, %96 : vector<8x32xf32>
    %c32_i32 = arith.constant 32 : i32
    %98 = vector.broadcast %c32_i32 : i32 to vector<8x32xi32>
    %99 = arith.select %97, %93, %98 : vector<8x32xi1>, vector<8x32xi32>
    %cst_42 = arith.constant dense<2147483647> : vector<8xi32>
    %100 = vector.multi_reduction <minsi>, %99, %cst_42 [1] : vector<8x32xi32> to vector<8xi32>
    %101 = vector.shape_cast %100 : vector<8xi32> to vector<8x1xi32>
    %102 = vector.broadcast %101 : vector<8x1xi32> to vector<8x32xi32>
    %103 = arith.cmpi eq, %93, %102 : vector<8x32xi32>
    %104 = arith.extui %103 : vector<8x32xi1> to vector<8x32xi32>
    %105 = arith.sitofp %104 : vector<8x32xi32> to vector<8x32xf32>
    %cst_43 = arith.constant 0.000000e+00 : f32
    %106 = vector.broadcast %cst_43 : f32 to vector<8x64xf32>
    %107 = arith.maximumf %18, %106 : vector<8x64xf32>
    %cst_44 = arith.constant dense<0.000000e+00> : vector<8x64xf32>
    %108 = tpu.matmul %107, %7, %cst_44 {dimension_numbers = #tpu.dot_dimension_numbers<[1], [0], [0], [1], [0, 0, 1, 1], [], []>} : vector<8x64xf32>, vector<64x64xf32>, vector<8x64xf32> -> vector<8x64xf32>
    %cst_45 = arith.constant dense<0.000000e+00> : vector<8x64xf32>
    %109 = tpu.matmul %105, %8, %cst_45 {dimension_numbers = #tpu.dot_dimension_numbers<[1], [0], [0], [1], [0, 0, 1, 1], [], []>} : vector<8x32xf32>, vector<32x64xf32>, vector<8x64xf32> -> vector<8x64xf32>
    %110 = arith.addf %108, %109 : vector<8x64xf32>
    %111 = vector.broadcast %9 : vector<1x64xf32> to vector<8x64xf32>
    %112 = arith.addf %110, %111 : vector<8x64xf32>
    %cst_46 = arith.constant 0.000000e+00 : f32
    %113 = vector.broadcast %cst_46 : f32 to vector<8x64xf32>
    %114 = arith.maximumf %112, %113 : vector<8x64xf32>
    %cst_47 = arith.constant dense<0.000000e+00> : vector<8x128xf32>
    %115 = tpu.matmul %114, %1, %cst_47 {dimension_numbers = #tpu.dot_dimension_numbers<[1], [0], [0], [1], [0, 0, 1, 1], [], []>} : vector<8x64xf32>, vector<64x128xf32>, vector<8x128xf32> -> vector<8x128xf32>
    %116 = vector.broadcast %3 : vector<1x128xf32> to vector<8x128xf32>
    %117 = arith.addf %115, %116 : vector<8x128xf32>
    %c0_48 = arith.constant 0 : index
    %c0_49 = arith.constant 0 : index
    %118 = vector.load %arg6[%c0_48, %c0_49] : memref<8x128xf32, #tpu.memory_space<vmem>>, vector<8x128xf32>
    tpu.vector_store %arg6[%c0_48, %c0_49], %117 {strides = array<i32>} : memref<8x128xf32, #tpu.memory_space<vmem>>, vector<8x128xf32>,
    return
  }
  func.func @transform_0(%arg0: i32) -> (i32, i32) {
    %c0_i32 = arith.constant 0 : i32
    %c0_i32_0 = arith.constant 0 : i32
    return %arg0, %c0_i32 : i32, i32
  }
  func.func @transform_1(%arg0: i32) -> (i32, i32, i32) {
    %c0_i32 = arith.constant 0 : i32
    %c0_i32_0 = arith.constant 0 : i32
    %c0_i32_1 = arith.constant 0 : i32
    return %c0_i32, %arg0, %c0_i32_0 : i32, i32, i32
  }
  func.func @transform_2(%arg0: i32) -> (i32, i32) {
    %c0_i32 = arith.constant 0 : i32
    %c0_i32_0 = arith.constant 0 : i32
    %c0_i32_1 = arith.constant 0 : i32
    return %c0_i32, %c0_i32_0 : i32, i32
  }
  func.func @transform_3(%arg0: i32) -> (i32, i32) {
    %c0_i32 = arith.constant 0 : i32
    %c0_i32_0 = arith.constant 0 : i32
    %c0_i32_1 = arith.constant 0 : i32
    return %c0_i32, %c0_i32_0 : i32, i32
  }
  func.func @transform_4(%arg0: i32) -> (i32, i32) {
    %c0_i32 = arith.constant 0 : i32
    %c0_i32_0 = arith.constant 0 : i32
    %c0_i32_1 = arith.constant 0 : i32
    return %c0_i32, %c0_i32_0 : i32, i32
  }
  func.func @transform_5(%arg0: i32) -> (i32, i32) {
    %c0_i32 = arith.constant 0 : i32
    %c0_i32_0 = arith.constant 0 : i32
    return %arg0, %c0_i32 : i32, i32
  }
}

</mosaic_0001>

<llo_original>
// kernel: tpu_custom_call.1
$region0: #{tpu_custom_call.1}
  #allocation0 [shape = 'u32[]', space=smem, size = 0x4, offset = 0x4, fixed_abs, tag = 'smem constant byte address 0x4 - core index']
  #allocation1 [shape = 'u32[144,128]{1,0:T(1,128)}', space=vmem, size = 0x12000, scoped, tag = 'internal scratch']
  %s0 = inlined_call_operand.vmem [shape: f32[8,40], index: 0, kind: input, shape index: {}]
  %s1 = inlined_call_operand.vmem [shape: f32[3,8,24], index: 1, kind: input, shape index: {}]
  %s2 = inlined_call_operand.vmem [shape: f32[144,128], index: 2, kind: input, shape index: {}]
  %s3 = inlined_call_operand.vmem [shape: f32[104,64], index: 3, kind: input, shape index: {}]
  %s4 = inlined_call_operand.vmem [shape: f32[72,32], index: 4, kind: input, shape index: {}]
  %s5 = inlined_call_operand.hbm [shape: f32[8,128], index: 5, kind: output, shape index: {}]
  %s6 = sld [smem:[#allocation0]]
  $region30: #{tpu_custom_call.1} parent=0
    _
  %s8 = ssub.s32 1, %s6
  %s9 = scalar_select 0, %s8, %s6
  $region1: #{tpu_custom_call.1} parent=0
    #allocation2 [shape = 'u8[4096]{0}', space=vmem, size = 0x1000, scoped, tag = 'output window, operand 0, single buffered']
    #allocation3 [shape = 's32[1]{0}', space=sflag, size = 0x4, scoped, tag = 'scoped memory for tpu_custom_call.1']
    %10 = vsyncpa [#allocation3], 0
    // Predicated region
    $region2: #{tpu_custom_call.1} parent=1 // pred_check
      _
    $region3: #{tpu_custom_call.1} parent=1 // pred_check_branch
      %12 = sbr.rel (0) target = $region5
    $region4: #{tpu_custom_call.1} parent=1 // pred_region
      _
    $region5: #{tpu_custom_call.1} parent=1 // pred_fallthru
      _
    // Predicated region
    $region6: #{tpu_custom_call.1} parent=1 // pred_check
      _
    $region7: #{tpu_custom_call.1} parent=1 // pred_check_branch
      %14 = sbr.rel (0) target = $region9
    $region8: #{tpu_custom_call.1} parent=1 // pred_region
      _
    $region9: #{tpu_custom_call.1} parent=1 // pred_fallthru
      _
    // Predicated region
    $region10: #{tpu_custom_call.1} parent=1 // pred_check
      _
    $region11: #{tpu_custom_call.1} parent=1 // pred_check_branch
      %16 = sbr.rel (0) target = $region13
    $region12: #{tpu_custom_call.1} parent=1 // pred_region
      _
    $region13: #{tpu_custom_call.1} parent=1 // pred_fallthru
      _
    // Predicated region
    $region14: #{tpu_custom_call.1} parent=1 // pred_check
      _
    $region15: #{tpu_custom_call.1} parent=1 // pred_check_branch
      %18 = sbr.rel (0) target = $region17
    $region16: #{tpu_custom_call.1} parent=1 // pred_region
      _
    $region17: #{tpu_custom_call.1} parent=1 // pred_fallthru
      _
    // Predicated region
    $region18: #{tpu_custom_call.1} parent=1 // pred_check
      _
    $region19: #{tpu_custom_call.1} parent=1 // pred_check_branch
      %20 = sbr.rel (0) target = $region21
    $region20: #{tpu_custom_call.1} parent=1 // pred_region
      _
    $region21: #{tpu_custom_call.1} parent=1 // pred_fallthru
      _
    %v21 = vld [vmem:[%s2] sm:$0xff]
    %v22 = vld [vmem:[%s2 + $0x8] sm:$0xff]
    %v23 = vld [vmem:[%s2 + $0x10] sm:$0xff]
    %v24 = vld [vmem:[%s2 + $0x18] sm:$0xff]
    %v25 = vld [vmem:[%s2 + $0x20] sm:$0xff]
    %v26 = vld [vmem:[%s2 + $0x28] sm:$0xff]
    %v27 = vld [vmem:[%s2 + $0x30] sm:$0xff]
    %v28 = vld [vmem:[%s2 + $0x38] sm:$0xff]
    %v29 = vld [vmem:[%s2 + $0x40] sm:$0xff]
    %v30 = vld [vmem:[%s2 + $0x48] sm:$0xff]
    %v31 = vld [vmem:[%s2 + $0x50] sm:$0xff]
    %v32 = vld [vmem:[%s2 + $0x58] sm:$0xff]
    %v33 = vld [vmem:[%s2 + $0x60] sm:$0xff]
    %v34 = vld [vmem:[%s2 + $0x68] sm:$0x1]
    %v35 = vld [vmem:[%s2 + $0x70] sm:$0x1]
    %v36 = vld [vmem:[%s2 + $0x78] sm:$0x1]
    %v37 = vld [vmem:[%s2 + $0x80] sm:$0x1]
    %v38 = vld [vmem:[%s2 + $0x88] sm:$0x1]
    %v39 = vld [vmem:[%s3] sm:$0xff]
    %v40 = vld [vmem:[%s3 + $0x8] sm:$0xff]
    %v41 = vld [vmem:[%s3 + $0x10] sm:$0xff]
    %v42 = vld [vmem:[%s3 + $0x18] sm:$0xff]
    %v43 = vld [vmem:[%s3 + $0x20] sm:$0xff]
    %v44 = vld [vmem:[%s3 + $0x28] sm:$0xff]
    %v45 = vld [vmem:[%s3 + $0x30] sm:$0xff]
    %v46 = vld [vmem:[%s3 + $0x38] sm:$0xff]
    %v47 = vld [vmem:[%s3 + $0x40] sm:$0xff]
    %v48 = vld [vmem:[%s3 + $0x48] sm:$0xff]
    %v49 = vld [vmem:[%s3 + $0x50] sm:$0xff]
    %v50 = vld [vmem:[%s3 + $0x58] sm:$0xff]
    %v51 = vld [vmem:[%s3 + $0x60] sm:$0x1]
    %v52 = vld [vmem:[%s4] sm:$0xff]
    %v53 = vld [vmem:[%s4 + $0x8] sm:$0xff]
    %v54 = vld [vmem:[%s4 + $0x10] sm:$0xff]
    %v55 = vld [vmem:[%s4 + $0x18] sm:$0xff]
    %v56 = vld [vmem:[%s4 + $0x20] sm:$0xff]
    %v57 = vld [vmem:[%s4 + $0x28] sm:$0xff]
    %v58 = vld [vmem:[%s4 + $0x30] sm:$0xff]
    %v59 = vld [vmem:[%s4 + $0x38] sm:$0x1]
    %v60 = vld [vmem:[%s4 + $0x40] sm:$0x1]
    %v61 = vld [vmem:[%s0] sm:$0xff]
    %v62 = vlaneseq
    %v63 = vshrl.u32 %v62, 7
    %v64 = vsub.s32 0, %v63
    %v65 = vrot.slane %v34, %v64
    %vm66 = vcmask 326656
    %v68 = vsel %vm66, %v61, 0
    %70 = vmatprep.subr.mxu0 0.0
    %71 = vmatpush1.msra.mxu0 0.0
    %72 = vmatprep.subr.mxu0 0.0
    %73 = vmatpush1.msra.mxu0 0.0
    %74 = vmatprep.subr.mxu0 0.0
    %75 = vmatpush1.msra.mxu0 0.0
    %76 = vmatprep.subr.mxu0 0.0
    %77 = vmatpush1.msra.mxu0 0.0
    %78 = vmatprep.subr.mxu0 0.0
    %79 = vmatpush1.msra.mxu0 0.0
    %80 = vmatprep.subr.mxu0 0.0
    %81 = vmatpush1.msra.mxu0 0.0
    %82 = vmatprep.subr.mxu0 0.0
    %83 = vmatpush1.msra.mxu0 0.0
    %84 = vmatprep.subr.mxu0 0.0
    %85 = vmatpush1.msra.mxu0 0.0
    %86 = vmatprep.subr.mxu0 0.0
    %87 = vmatpush1.msra.mxu0 0.0
    %88 = vmatprep.subr.mxu0 0.0
    %89 = vmatpush1.msra.mxu0 0.0
    %90 = vmatprep.subr.mxu0 0.0
    %91 = vmatpush1.msra.mxu0 0.0
    %92 = vmatprep.subr.mxu0 0.0
    %93 = vmatpush1.msra.mxu0 %v25
    %94 = vmatprep.subr.mxu0 0.0
    %95 = vmatpush1.msra.mxu0 %v24
    %96 = vmatprep.subr.mxu0 0.0
    %97 = vmatpush1.msra.mxu0 %v23
    %98 = vmatprep.subr.mxu0 0.0
    %99 = vmatpush1.msra.mxu0 %v22
    %100 = vmatprep.subr.mxu0 0.0
    %101 = vmatpush1.msra.mxu0 %v21
    %102 = vmatprep.subr.mxu0 0.0
    %103 = vmatpush2.msra.mxu0 0.0
    %104 = vmatprep.subr.mxu0 0.0
    %105 = vmatpush2.msra.mxu0 0.0
    %106 = vmatprep.subr.mxu0 0.0
    %107 = vmatpush2.msra.mxu0 0.0
    %108 = vmatprep.subr.mxu0 0.0
    %109 = vmatpush2.msra.mxu0 0.0
    %110 = vmatprep.subr.mxu0 0.0
    %111 = vmatpush2.msra.mxu0 0.0
    %112 = vmatprep.subr.mxu0 0.0
    %113 = vmatpush2.msra.mxu0 0.0
    %114 = vmatprep.subr.mxu0 0.0
    %115 = vmatpush2.msra.mxu0 0.0
    %116 = vmatprep.subr.mxu0 0.0
    %117 = vmatpush2.msra.mxu0 0.0
    %118 = vmatprep.subr.mxu0 0.0
    %119 = vmatpush2.msra.mxu0 0.0
    %120 = vmatprep.subr.mxu0 0.0
    %121 = vmatpush2.msra.mxu0 0.0
    %122 = vmatprep.subr.mxu0 0.0
    %123 = vmatpush2.msra.mxu0 0.0
    %124 = vmatprep.subr.mxu0 0.0
    %125 = vmatpush2.msra.mxu0 0.0
    %126 = vmatprep.subr.mxu0 0.0
    %127 = vmatpush2.msra.mxu0 0.0
    %128 = vmatprep.subr.mxu0 0.0
    %129 = vmatpush2.msra.mxu0 0.0
    %130 = vmatprep.subr.mxu0 0.0
    %131 = vmatpush2.msra.mxu0 0.0
    %132 = vmatprep.subr.mxu0 0.0
    %133 = vmatpush2.msra.mxu0 0.0
    %134 = vmatprep.mubr.f32.mxu0 0.0
    %135 = vmatmul.mubr.f32.gmra.mxu0 %v68
    %v136 = vpop.f32.mrf.mxu0
    %v137 = vadd.f32 %v65, %v136
    %v138 = vpop.f32.mrf.mxu0
    %139 = vdwg.mxu0
    %v140 = vmax.f32 %v137, 0.0
    %v141 = vlaneseq
    %v142 = vshrl.u32 %v141, 7
    %v143 = vsub.s32 0, %v142
    %v144 = vrot.slane %v36, %v143
    %146 = vrot.lane.b32.xlu0 %v144, 64
    %v147 = vpop.permute.xlu0 %146
    %v149 = vmul.f32 %v140, %v147
    %151 = vrot.lane.b32.xlu0 %v149, 64
    %v152 = vpop.permute.xlu0 %151
    %vm154 = vcmask 523264
    %v155 = vsel %vm154, %v152, 0.0
    %156 = vadd.xlane.f32.xlu0 %v155
    %v157 = vpop.xlane.xlu0 %156
    %v158 = vlaneseq
    %v159 = vshrl.u32 %v158, 7
    %v160 = vsub.s32 0, %v159
    %v161 = vrot.slane %v38, %v160
    %v162 = vadd.f32 %v157, %v161
    %v163 = vld [vmem:[%s1] sm:$0xff]
    %v164 = vlaneseq
    %v165 = vshrl.u32 %v164, 7
    %v166 = vsub.s32 0, %v165
    %v167 = vrot.slane %v59, %v166
    %vm168 = vcmask 195584
    %v170 = vsel %vm168, %v163, 0
    %172 = vmatprep.subr.mxu0 0.0
    %173 = vmatpush1.msra.mxu0 0.0
    %174 = vmatprep.subr.mxu0 0.0
    %175 = vmatpush1.msra.mxu0 0.0
    %176 = vmatprep.subr.mxu0 0.0
    %177 = vmatpush1.msra.mxu0 0.0
    %178 = vmatprep.subr.mxu0 0.0
    %179 = vmatpush1.msra.mxu0 0.0
    %180 = vmatprep.subr.mxu0 0.0
    %181 = vmatpush1.msra.mxu0 0.0
    %182 = vmatprep.subr.mxu0 0.0
    %183 = vmatpush1.msra.mxu0 0.0
    %184 = vmatprep.subr.mxu0 0.0
    %185 = vmatpush1.msra.mxu0 0.0
    %186 = vmatprep.subr.mxu0 0.0
    %187 = vmatpush1.msra.mxu0 0.0
    %188 = vmatprep.subr.mxu0 0.0
    %189 = vmatpush1.msra.mxu0 0.0
    %190 = vmatprep.subr.mxu0 0.0
    %191 = vmatpush1.msra.mxu0 0.0
    %192 = vmatprep.subr.mxu0 0.0
    %193 = vmatpush1.msra.mxu0 0.0
    %194 = vmatprep.subr.mxu0 0.0
    %195 = vmatpush1.msra.mxu0 0.0
    %196 = vmatprep.subr.mxu0 0.0
    %197 = vmatpush1.msra.mxu0 0.0
    %198 = vmatprep.subr.mxu0 0.0
    %199 = vmatpush1.msra.mxu0 %v54
    %200 = vmatprep.subr.mxu0 0.0
    %201 = vmatpush1.msra.mxu0 %v53
    %202 = vmatprep.subr.mxu0 0.0
    %203 = vmatpush1.msra.mxu0 %v52
    %204 = vmatprep.subr.mxu0 0.0
    %205 = vmatpush2.msra.mxu0 0.0
    %206 = vmatprep.subr.mxu0 0.0
    %207 = vmatpush2.msra.mxu0 0.0
    %208 = vmatprep.subr.mxu0 0.0
    %209 = vmatpush2.msra.mxu0 0.0
    %210 = vmatprep.subr.mxu0 0.0
    %211 = vmatpush2.msra.mxu0 0.0
    %212 = vmatprep.subr.mxu0 0.0
    %213 = vmatpush2.msra.mxu0 0.0
    %214 = vmatprep.subr.mxu0 0.0
    %215 = vmatpush2.msra.mxu0 0.0
    %216 = vmatprep.subr.mxu0 0.0
    %217 = vmatpush2.msra.mxu0 0.0
    %218 = vmatprep.subr.mxu0 0.0
    %219 = vmatpush2.msra.mxu0 0.0
    %220 = vmatprep.subr.mxu0 0.0
    %221 = vmatpush2.msra.mxu0 0.0
    %222 = vmatprep.subr.mxu0 0.0
    %223 = vmatpush2.msra.mxu0 0.0
    %224 = vmatprep.subr.mxu0 0.0
    %225 = vmatpush2.msra.mxu0 0.0
    %226 = vmatprep.subr.mxu0 0.0
    %227 = vmatpush2.msra.mxu0 0.0
    %228 = vmatprep.subr.mxu0 0.0
    %229 = vmatpush2.msra.mxu0 0.0
    %230 = vmatprep.subr.mxu0 0.0
    %231 = vmatpush2.msra.mxu0 0.0
    %232 = vmatprep.subr.mxu0 0.0
    %233 = vmatpush2.msra.mxu0 0.0
    %234 = vmatprep.subr.mxu0 0.0
    %235 = vmatpush2.msra.mxu0 0.0
    %236 = vmatprep.mubr.f32.mxu0 0.0
    %237 = vmatmul.mubr.f32.gmra.mxu0 %v170
    %v238 = vpop.f32.mrf.mxu0
    %v239 = vadd.f32 %v167, %v238
    %v240 = vpop.f32.mrf.mxu0
    %241 = vdwg.mxu0
    %v242 = vmax.f32 %v239, 0.0
    %v243 = vlaneseq
    %v244 = vshrl.u32 %v243, 7
    %v245 = vsub.s32 0, %v244
    %v246 = vrot.slane %v37, %v245
    %v247 = vmul.f32 %v242, %v246
    %vm248 = vcmask 261120
    %v249 = vsel %vm248, %v247, 0.0
    %250 = vadd.xlane.f32.xlu0 %v249
    %v251 = vpop.xlane.xlu0 %250
    %v252 = vadd.f32 %v162, %v251
    %s253 = scalar_lea.vmem %s1, 8
    %v254 = vld [vmem:[%s253] sm:$0xff]
    %v256 = vsel %vm168, %v254, 0
    %258 = vmatprep.subr.mxu0 0.0
    %259 = vmatpush1.msra.mxu0 0.0
    %260 = vmatprep.subr.mxu0 0.0
    %261 = vmatpush1.msra.mxu0 0.0
    %262 = vmatprep.subr.mxu0 0.0
    %263 = vmatpush1.msra.mxu0 0.0
    %264 = vmatprep.subr.mxu0 0.0
    %265 = vmatpush1.msra.mxu0 0.0
    %266 = vmatprep.subr.mxu0 0.0
    %267 = vmatpush1.msra.mxu0 0.0
    %268 = vmatprep.subr.mxu0 0.0
    %269 = vmatpush1.msra.mxu0 0.0
    %270 = vmatprep.subr.mxu0 0.0
    %271 = vmatpush1.msra.mxu0 0.0
    %272 = vmatprep.subr.mxu0 0.0
    %273 = vmatpush1.msra.mxu0 0.0
    %274 = vmatprep.subr.mxu0 0.0
    %275 = vmatpush1.msra.mxu0 0.0
    %276 = vmatprep.subr.mxu0 0.0
    %277 = vmatpush1.msra.mxu0 0.0
    %278 = vmatprep.subr.mxu0 0.0
    %279 = vmatpush1.msra.mxu0 0.0
    %280 = vmatprep.subr.mxu0 0.0
    %281 = vmatpush1.msra.mxu0 0.0
    %282 = vmatprep.subr.mxu0 0.0
    %283 = vmatpush1.msra.mxu0 0.0
    %284 = vmatprep.subr.mxu0 0.0
    %285 = vmatpush1.msra.mxu0 %v54
    %286 = vmatprep.subr.mxu0 0.0
    %287 = vmatpush1.msra.mxu0 %v53
    %288 = vmatprep.subr.mxu0 0.0
    %289 = vmatpush1.msra.mxu0 %v52
    %290 = vmatprep.subr.mxu0 0.0
    %291 = vmatpush2.msra.mxu0 0.0
    %292 = vmatprep.subr.mxu0 0.0
    %293 = vmatpush2.msra.mxu0 0.0
    %294 = vmatprep.subr.mxu0 0.0
    %295 = vmatpush2.msra.mxu0 0.0
    %296 = vmatprep.subr.mxu0 0.0
    %297 = vmatpush2.msra.mxu0 0.0
    %298 = vmatprep.subr.mxu0 0.0
    %299 = vmatpush2.msra.mxu0 0.0
    %300 = vmatprep.subr.mxu0 0.0
    %301 = vmatpush2.msra.mxu0 0.0
    %302 = vmatprep.subr.mxu0 0.0
    %303 = vmatpush2.msra.mxu0 0.0
    %304 = vmatprep.subr.mxu0 0.0
    %305 = vmatpush2.msra.mxu0 0.0
    %306 = vmatprep.subr.mxu0 0.0
    %307 = vmatpush2.msra.mxu0 0.0
    %308 = vmatprep.subr.mxu0 0.0
    %309 = vmatpush2.msra.mxu0 0.0
    %310 = vmatprep.subr.mxu0 0.0
    %311 = vmatpush2.msra.mxu0 0.0
    %312 = vmatprep.subr.mxu0 0.0
    %313 = vmatpush2.msra.mxu0 0.0
    %314 = vmatprep.subr.mxu0 0.0
    %315 = vmatpush2.msra.mxu0 0.0
    %316 = vmatprep.subr.mxu0 0.0
    %317 = vmatpush2.msra.mxu0 0.0
    %318 = vmatprep.subr.mxu0 0.0
    %319 = vmatpush2.msra.mxu0 0.0
    %320 = vmatprep.subr.mxu0 0.0
    %321 = vmatpush2.msra.mxu0 0.0
    %322 = vmatprep.mubr.f32.mxu0 0.0
    %323 = vmatmul.mubr.f32.gmra.mxu0 %v256
    %v324 = vpop.f32.mrf.mxu0
    %v325 = vadd.f32 %v167, %v324
    %v326 = vpop.f32.mrf.mxu0
    %327 = vdwg.mxu0
    %v328 = vmax.f32 %v325, 0.0
    %v329 = vmul.f32 %v328, %v246
    %v330 = vsel %vm248, %v329, 0.0
    %331 = vadd.xlane.f32.xlu0 %v330
    %v332 = vpop.xlane.xlu0 %331
    %v333 = vadd.f32 %v162, %v332
    %s334 = scalar_lea.vmem %s1, 16
    %v335 = vld [vmem:[%s334] sm:$0xff]
    %v337 = vsel %vm168, %v335, 0
    %339 = vmatprep.subr.mxu0 0.0
    %340 = vmatpush1.msra.mxu0 0.0
    %341 = vmatprep.subr.mxu0 0.0
    %342 = vmatpush1.msra.mxu0 0.0
    %343 = vmatprep.subr.mxu0 0.0
    %344 = vmatpush1.msra.mxu0 0.0
    %345 = vmatprep.subr.mxu0 0.0
    %346 = vmatpush1.msra.mxu0 0.0
    %347 = vmatprep.subr.mxu0 0.0
    %348 = vmatpush1.msra.mxu0 0.0
    %349 = vmatprep.subr.mxu0 0.0
    %350 = vmatpush1.msra.mxu0 0.0
    %351 = vmatprep.subr.mxu0 0.0
    %352 = vmatpush1.msra.mxu0 0.0
    %353 = vmatprep.subr.mxu0 0.0
    %354 = vmatpush1.msra.mxu0 0.0
    %355 = vmatprep.subr.mxu0 0.0
    %356 = vmatpush1.msra.mxu0 0.0
    %357 = vmatprep.subr.mxu0 0.0
    %358 = vmatpush1.msra.mxu0 0.0
    %359 = vmatprep.subr.mxu0 0.0
    %360 = vmatpush1.msra.mxu0 0.0
    %361 = vmatprep.subr.mxu0 0.0
    %362 = vmatpush1.msra.mxu0 0.0
    %363 = vmatprep.subr.mxu0 0.0
    %364 = vmatpush1.msra.mxu0 0.0
    %365 = vmatprep.subr.mxu0 0.0
    %366 = vmatpush1.msra.mxu0 %v54
    %367 = vmatprep.subr.mxu0 0.0
    %368 = vmatpush1.msra.mxu0 %v53
    %369 = vmatprep.subr.mxu0 0.0
    %370 = vmatpush1.msra.mxu0 %v52
    %371 = vmatprep.subr.mxu0 0.0
    %372 = vmatpush2.msra.mxu0 0.0
    %373 = vmatprep.subr.mxu0 0.0
    %374 = vmatpush2.msra.mxu0 0.0
    %375 = vmatprep.subr.mxu0 0.0
    %376 = vmatpush2.msra.mxu0 0.0
    %377 = vmatprep.subr.mxu0 0.0
    %378 = vmatpush2.msra.mxu0 0.0
    %379 = vmatprep.subr.mxu0 0.0
    %380 = vmatpush2.msra.mxu0 0.0
    %381 = vmatprep.subr.mxu0 0.0
    %382 = vmatpush2.msra.mxu0 0.0
    %383 = vmatprep.subr.mxu0 0.0
    %384 = vmatpush2.msra.mxu0 0.0
    %385 = vmatprep.subr.mxu0 0.0
    %386 = vmatpush2.msra.mxu0 0.0
    %387 = vmatprep.subr.mxu0 0.0
    %388 = vmatpush2.msra.mxu0 0.0
    %389 = vmatprep.subr.mxu0 0.0
    %390 = vmatpush2.msra.mxu0 0.0
    %391 = vmatprep.subr.mxu0 0.0
    %392 = vmatpush2.msra.mxu0 0.0
    %393 = vmatprep.subr.mxu0 0.0
    %394 = vmatpush2.msra.mxu0 0.0
    %395 = vmatprep.subr.mxu0 0.0
    %396 = vmatpush2.msra.mxu0 0.0
    %397 = vmatprep.subr.mxu0 0.0
    %398 = vmatpush2.msra.mxu0 0.0
    %399 = vmatprep.subr.mxu0 0.0
    %400 = vmatpush2.msra.mxu0 0.0
    %401 = vmatprep.subr.mxu0 0.0
    %402 = vmatpush2.msra.mxu0 0.0
    %403 = vmatprep.mubr.f32.mxu0 0.0
    %404 = vmatmul.mubr.f32.gmra.mxu0 %v337
    %v405 = vpop.f32.mrf.mxu0
    %v406 = vadd.f32 %v167, %v405
    %v407 = vpop.f32.mrf.mxu0
    %408 = vdwg.mxu0
    %v409 = vmax.f32 %v406, 0.0
    %v410 = vmul.f32 %v409, %v246
    %v411 = vsel %vm248, %v410, 0.0
    %412 = vadd.xlane.f32.xlu0 %v411
    %v413 = vpop.xlane.xlu0 %412
    %v414 = vadd.f32 %v162, %v413
    %v415 = vmax.f32 %v252, %v333
    %v416 = vmax.f32 %v415, %v414
    %v417 = vsub.f32 %v252, %v416
    %v418 = vmul.f32 %v417, 1.442695
    %v419 = vpow.pop %v418
    %v420 = vadd.f32 %v419, 0.0
    %422 = vset.pattern.permute.xlu0 0
    %423 = vperm.xlu0 %422, %v419
    %v424 = vpop.permute.xlu0 %423
    %v426 = vmul.f32 %v424, %v242
    %v427 = vadd.f32 %v426, 0.0
    %v428 = vsub.f32 %v333, %v416
    %v429 = vmul.f32 %v428, 1.442695
    %v430 = vpow.pop %v429
    %v431 = vadd.f32 %v420, %v430
    %433 = vset.pattern.permute.xlu0 0
    %434 = vperm.xlu0 %433, %v430
    %v435 = vpop.permute.xlu0 %434
    %v437 = vmul.f32 %v435, %v328
    %v438 = vadd.f32 %v427, %v437
    %v439 = vsub.f32 %v414, %v416
    %v440 = vmul.f32 %v439, 1.442695
    %v441 = vpow.pop %v440
    %v442 = vadd.f32 %v431, %v441
    %444 = vset.pattern.permute.xlu0 0
    %445 = vperm.xlu0 %444, %v441
    %v446 = vpop.permute.xlu0 %445
    %v448 = vmul.f32 %v446, %v409
    %v449 = vadd.f32 %v438, %v448
    %451 = vset.pattern.permute.xlu0 0
    %452 = vperm.xlu0 %451, %v442
    %v453 = vpop.permute.xlu0 %452
    %v455 = vrcp.pop %v453
    %v456 = vmul.f32 %v449, %v455
    %v457 = vmax.f32 %v456, 0.0
    %v458 = vlaneseq
    %v459 = vshrl.u32 %v458, 7
    %v460 = vsub.s32 0, %v459
    %v461 = vrot.slane %v60, %v460
    %v463 = vsel %vm248, %v457, 0
    %465 = vmatprep.subr.mxu0 0.0
    %466 = vmatpush1.msra.mxu0 0.0
    %467 = vmatprep.subr.mxu0 0.0
    %468 = vmatpush1.msra.mxu0 0.0
    %469 = vmatprep.subr.mxu0 0.0
    %470 = vmatpush1.msra.mxu0 0.0
    %471 = vmatprep.subr.mxu0 0.0
    %472 = vmatpush1.msra.mxu0 0.0
    %473 = vmatprep.subr.mxu0 0.0
    %474 = vmatpush1.msra.mxu0 0.0
    %475 = vmatprep.subr.mxu0 0.0
    %476 = vmatpush1.msra.mxu0 0.0
    %477 = vmatprep.subr.mxu0 0.0
    %478 = vmatpush1.msra.mxu0 0.0
    %479 = vmatprep.subr.mxu0 0.0
    %480 = vmatpush1.msra.mxu0 0.0
    %481 = vmatprep.subr.mxu0 0.0
    %482 = vmatpush1.msra.mxu0 0.0
    %483 = vmatprep.subr.mxu0 0.0
    %484 = vmatpush1.msra.mxu0 0.0
    %485 = vmatprep.subr.mxu0 0.0
    %486 = vmatpush1.msra.mxu0 0.0
    %487 = vmatprep.subr.mxu0 0.0
    %488 = vmatpush1.msra.mxu0 0.0
    %489 = vmatprep.subr.mxu0 0.0
    %490 = vmatpush1.msra.mxu0 %v58
    %491 = vmatprep.subr.mxu0 0.0
    %492 = vmatpush1.msra.mxu0 %v57
    %493 = vmatprep.subr.mxu0 0.0
    %494 = vmatpush1.msra.mxu0 %v56
    %495 = vmatprep.subr.mxu0 0.0
    %496 = vmatpush1.msra.mxu0 %v55
    %497 = vmatprep.subr.mxu0 0.0
    %498 = vmatpush2.msra.mxu0 0.0
    %499 = vmatprep.subr.mxu0 0.0
    %500 = vmatpush2.msra.mxu0 0.0
    %501 = vmatprep.subr.mxu0 0.0
    %502 = vmatpush2.msra.mxu0 0.0
    %503 = vmatprep.subr.mxu0 0.0
    %504 = vmatpush2.msra.mxu0 0.0
    %505 = vmatprep.subr.mxu0 0.0
    %506 = vmatpush2.msra.mxu0 0.0
    %507 = vmatprep.subr.mxu0 0.0
    %508 = vmatpush2.msra.mxu0 0.0
    %509 = vmatprep.subr.mxu0 0.0
    %510 = vmatpush2.msra.mxu0 0.0
    %511 = vmatprep.subr.mxu0 0.0
    %512 = vmatpush2.msra.mxu0 0.0
    %513 = vmatprep.subr.mxu0 0.0
    %514 = vmatpush2.msra.mxu0 0.0
    %515 = vmatprep.subr.mxu0 0.0
    %516 = vmatpush2.msra.mxu0 0.0
    %517 = vmatprep.subr.mxu0 0.0
    %518 = vmatpush2.msra.mxu0 0.0
    %519 = vmatprep.subr.mxu0 0.0
    %520 = vmatpush2.msra.mxu0 0.0
    %521 = vmatprep.subr.mxu0 0.0
    %522 = vmatpush2.msra.mxu0 0.0
    %523 = vmatprep.subr.mxu0 0.0
    %524 = vmatpush2.msra.mxu0 0.0
    %525 = vmatprep.subr.mxu0 0.0
    %526 = vmatpush2.msra.mxu0 0.0
    %527 = vmatprep.subr.mxu0 0.0
    %528 = vmatpush2.msra.mxu0 0.0
    %529 = vmatprep.mubr.f32.mxu0 0.0
    %530 = vmatmul.mubr.f32.gmra.mxu0 %v463
    %v531 = vpop.f32.mrf.mxu0
    %v532 = vadd.f32 %v461, %v531
    %v533 = vpop.f32.mrf.mxu0
    %534 = vdwg.mxu0
    %v535 = vlaneseq
    %v536 = vand.u32 %v535, 127
    %v537 = vsel %vm248, %v532, -inf
    %538 = vmax.xlane.f32.xlu0 %v537
    %v539 = vpop.xlane.xlu0 %538
    %vm540 = vcmp.ge.f32.partialorder %v532, %v539
    %v541 = vsel %vm540, %v536, 32
    %v542 = vsel %vm248, %v541, 2147483647
    %v543 = vand.u32 %v542, 65535
    %v544 = vshra.s32 %v542, 16
    %v545 = vcvt.s32.f32 %v543
    %v546 = vcvt.s32.f32 %v544
    %547 = vmin.xlane.f32.xlu0 %v546
    %v548 = vpop.xlane.xlu0 %547
    %vm549 = vcmp.eq.f32.partialorder %v546, %v548
    %v550 = vsel %vm549, %v545, inf
    %551 = vmin.xlane.f32.xlu0 %v550
    %v552 = vpop.xlane.xlu0 %551
    %v553 = vcvt.f32.s32 %v552
    %v554 = vcvt.f32.s32 %v548
    %v555 = vshll.u32 %v554, 16
    %v556 = vadd.s32 %v555, %v553
    %vm557 = vcmp.eq.s32.totalorder %v536, %v556
    %v558 = vsel %vm557, 1, 0
    %v559 = vcvt.s32.f32 %v558
    %v561 = vsel %vm248, %v559, 0
    %563 = vmatprep.subr.mxu0 0.0
    %564 = vmatpush1.msra.mxu0 0.0
    %565 = vmatprep.subr.mxu0 0.0
    %566 = vmatpush1.msra.mxu0 0.0
    %567 = vmatprep.subr.mxu0 0.0
    %568 = vmatpush1.msra.mxu0 0.0
    %569 = vmatprep.subr.mxu0 0.0
    %570 = vmatpush1.msra.mxu0 0.0
    %571 = vmatprep.subr.mxu0 0.0
    %572 = vmatpush1.msra.mxu0 0.0
    %573 = vmatprep.subr.mxu0 0.0
    %574 = vmatpush1.msra.mxu0 0.0
    %575 = vmatprep.subr.mxu0 0.0
    %576 = vmatpush1.msra.mxu0 0.0
    %577 = vmatprep.subr.mxu0 0.0
    %578 = vmatpush1.msra.mxu0 0.0
    %579 = vmatprep.subr.mxu0 0.0
    %580 = vmatpush1.msra.mxu0 0.0
    %581 = vmatprep.subr.mxu0 0.0
    %582 = vmatpush1.msra.mxu0 0.0
    %583 = vmatprep.subr.mxu0 0.0
    %584 = vmatpush1.msra.mxu0 0.0
    %585 = vmatprep.subr.mxu0 0.0
    %586 = vmatpush1.msra.mxu0 0.0
    %587 = vmatprep.subr.mxu0 0.0
    %588 = vmatpush1.msra.mxu0 %v50
    %589 = vmatprep.subr.mxu0 0.0
    %590 = vmatpush1.msra.mxu0 %v49
    %591 = vmatprep.subr.mxu0 0.0
    %592 = vmatpush1.msra.mxu0 %v48
    %593 = vmatprep.subr.mxu0 0.0
    %594 = vmatpush1.msra.mxu0 %v47
    %595 = vmatprep.subr.mxu0 0.0
    %596 = vmatpush2.msra.mxu0 0.0
    %597 = vmatprep.subr.mxu0 0.0
    %598 = vmatpush2.msra.mxu0 0.0
    %599 = vmatprep.subr.mxu0 0.0
    %600 = vmatpush2.msra.mxu0 0.0
    %601 = vmatprep.subr.mxu0 0.0
    %602 = vmatpush2.msra.mxu0 0.0
    %603 = vmatprep.subr.mxu0 0.0
    %604 = vmatpush2.msra.mxu0 0.0
    %605 = vmatprep.subr.mxu0 0.0
    %606 = vmatpush2.msra.mxu0 0.0
    %607 = vmatprep.subr.mxu0 0.0
    %608 = vmatpush2.msra.mxu0 0.0
    %609 = vmatprep.subr.mxu0 0.0
    %610 = vmatpush2.msra.mxu0 0.0
    %611 = vmatprep.subr.mxu0 0.0
    %612 = vmatpush2.msra.mxu0 0.0
    %613 = vmatprep.subr.mxu0 0.0
    %614 = vmatpush2.msra.mxu0 0.0
    %615 = vmatprep.subr.mxu0 0.0
    %616 = vmatpush2.msra.mxu0 0.0
    %617 = vmatprep.subr.mxu0 0.0
    %618 = vmatpush2.msra.mxu0 0.0
    %619 = vmatprep.subr.mxu0 0.0
    %620 = vmatpush2.msra.mxu0 0.0
    %621 = vmatprep.subr.mxu0 0.0
    %622 = vmatpush2.msra.mxu0 0.0
    %623 = vmatprep.subr.mxu0 0.0
    %624 = vmatpush2.msra.mxu0 0.0
    %625 = vmatprep.subr.mxu0 0.0
    %626 = vmatpush2.msra.mxu0 0.0
    %627 = vmatprep.mubr.f32.mxu0 0.0
    %628 = vmatmul.mubr.f32.gmra.mxu0 %v561
    %v629 = vpop.f32.mrf.mxu0
    %v630 = vadd.f32 0.0, %v629
    %v631 = vpop.f32.mrf.mxu0
    %632 = vdwg.mxu0
    %v634 = vsel %vm154, %v140, 0
    %636 = vmatprep.subr.mxu0 0.0
    %637 = vmatpush1.msra.mxu0 0.0
    %638 = vmatprep.subr.mxu0 0.0
    %639 = vmatpush1.msra.mxu0 0.0
    %640 = vmatprep.subr.mxu0 0.0
    %641 = vmatpush1.msra.mxu0 0.0
    %642 = vmatprep.subr.mxu0 0.0
    %643 = vmatpush1.msra.mxu0 0.0
    %644 = vmatprep.subr.mxu0 0.0
    %645 = vmatpush1.msra.mxu0 0.0
    %646 = vmatprep.subr.mxu0 0.0
    %647 = vmatpush1.msra.mxu0 0.0
    %648 = vmatprep.subr.mxu0 0.0
    %649 = vmatpush1.msra.mxu0 0.0
    %650 = vmatprep.subr.mxu0 0.0
    %651 = vmatpush1.msra.mxu0 0.0
    %652 = vmatprep.subr.mxu0 0.0
    %653 = vmatpush1.msra.mxu0 %v46
    %654 = vmatprep.subr.mxu0 0.0
    %655 = vmatpush1.msra.mxu0 %v45
    %656 = vmatprep.subr.mxu0 0.0
    %657 = vmatpush1.msra.mxu0 %v44
    %658 = vmatprep.subr.mxu0 0.0
    %659 = vmatpush1.msra.mxu0 %v43
    %660 = vmatprep.subr.mxu0 0.0
    %661 = vmatpush1.msra.mxu0 %v42
    %662 = vmatprep.subr.mxu0 0.0
    %663 = vmatpush1.msra.mxu0 %v41
    %664 = vmatprep.subr.mxu0 0.0
    %665 = vmatpush1.msra.mxu0 %v40
    %666 = vmatprep.subr.mxu0 0.0
    %667 = vmatpush1.msra.mxu0 %v39
    %668 = vmatprep.subr.mxu0 0.0
    %669 = vmatpush2.msra.mxu0 0.0
    %670 = vmatprep.subr.mxu0 0.0
    %671 = vmatpush2.msra.mxu0 0.0
    %672 = vmatprep.subr.mxu0 0.0
    %673 = vmatpush2.msra.mxu0 0.0
    %674 = vmatprep.subr.mxu0 0.0
    %675 = vmatpush2.msra.mxu0 0.0
    %676 = vmatprep.subr.mxu0 0.0
    %677 = vmatpush2.msra.mxu0 0.0
    %678 = vmatprep.subr.mxu0 0.0
    %679 = vmatpush2.msra.mxu0 0.0
    %680 = vmatprep.subr.mxu0 0.0
    %681 = vmatpush2.msra.mxu0 0.0
    %682 = vmatprep.subr.mxu0 0.0
    %683 = vmatpush2.msra.mxu0 0.0
    %684 = vmatprep.subr.mxu0 0.0
    %685 = vmatpush2.msra.mxu0 0.0
    %686 = vmatprep.subr.mxu0 0.0
    %687 = vmatpush2.msra.mxu0 0.0
    %688 = vmatprep.subr.mxu0 0.0
    %689 = vmatpush2.msra.mxu0 0.0
    %690 = vmatprep.subr.mxu0 0.0
    %691 = vmatpush2.msra.mxu0 0.0
    %692 = vmatprep.subr.mxu0 0.0
    %693 = vmatpush2.msra.mxu0 0.0
    %694 = vmatprep.subr.mxu0 0.0
    %695 = vmatpush2.msra.mxu0 0.0
    %696 = vmatprep.subr.mxu0 0.0
    %697 = vmatpush2.msra.mxu0 0.0
    %698 = vmatprep.subr.mxu0 0.0
    %699 = vmatpush2.msra.mxu0 0.0
    %700 = vmatprep.mubr.f32.mxu0 0.0
    %701 = vmatmul.mubr.f32.gmra.mxu0 %v634
    %v702 = vpop.f32.mrf.mxu0
    %v703 = vadd.f32 %v630, %v702
    %v704 = vpop.f32.mrf.mxu0
    %705 = vdwg.mxu0
    %v706 = vlaneseq
    %v707 = vshrl.u32 %v706, 7
    %v708 = vsub.s32 0, %v707
    %v709 = vrot.slane %v51, %v708
    %v710 = vadd.f32 %v703, %v709
    %v711 = vmax.f32 %v710, 0.0
    %v712 = vlaneseq
    %v713 = vshrl.u32 %v712, 7
    %v714 = vsub.s32 0, %v713
    %v715 = vrot.slane %v35, %v714
    %v717 = vsel %vm154, %v711, 0
    %719 = vmatprep.subr.mxu0 0.0
    %720 = vmatpush1.msra.mxu0 0.0
    %721 = vmatprep.subr.mxu0 0.0
    %722 = vmatpush1.msra.mxu0 0.0
    %723 = vmatprep.subr.mxu0 0.0
    %724 = vmatpush1.msra.mxu0 0.0
    %725 = vmatprep.subr.mxu0 0.0
    %726 = vmatpush1.msra.mxu0 0.0
    %727 = vmatprep.subr.mxu0 0.0
    %728 = vmatpush1.msra.mxu0 0.0
    %729 = vmatprep.subr.mxu0 0.0
    %730 = vmatpush1.msra.mxu0 0.0
    %731 = vmatprep.subr.mxu0 0.0
    %732 = vmatpush1.msra.mxu0 0.0
    %733 = vmatprep.subr.mxu0 0.0
    %734 = vmatpush1.msra.mxu0 0.0
    %735 = vmatprep.subr.mxu0 0.0
    %736 = vmatpush1.msra.mxu0 %v33
    %737 = vmatprep.subr.mxu0 0.0
    %738 = vmatpush1.msra.mxu0 %v32
    %739 = vmatprep.subr.mxu0 0.0
    %740 = vmatpush1.msra.mxu0 %v31
    %741 = vmatprep.subr.mxu0 0.0
    %742 = vmatpush1.msra.mxu0 %v30
    %743 = vmatprep.subr.mxu0 0.0
    %744 = vmatpush1.msra.mxu0 %v29
    %745 = vmatprep.subr.mxu0 0.0
    %746 = vmatpush1.msra.mxu0 %v28
    %747 = vmatprep.subr.mxu0 0.0
    %748 = vmatpush1.msra.mxu0 %v27
    %749 = vmatprep.subr.mxu0 0.0
    %750 = vmatpush1.msra.mxu0 %v26
    %751 = vmatprep.subr.mxu0 0.0
    %752 = vmatpush2.msra.mxu0 0.0
    %753 = vmatprep.subr.mxu0 0.0
    %754 = vmatpush2.msra.mxu0 0.0
    %755 = vmatprep.subr.mxu0 0.0
    %756 = vmatpush2.msra.mxu0 0.0
    %757 = vmatprep.subr.mxu0 0.0
    %758 = vmatpush2.msra.mxu0 0.0
    %759 = vmatprep.subr.mxu0 0.0
    %760 = vmatpush2.msra.mxu0 0.0
    %761 = vmatprep.subr.mxu0 0.0
    %762 = vmatpush2.msra.mxu0 0.0
    %763 = vmatprep.subr.mxu0 0.0
    %764 = vmatpush2.msra.mxu0 0.0
    %765 = vmatprep.subr.mxu0 0.0
    %766 = vmatpush2.msra.mxu0 0.0
    %767 = vmatprep.subr.mxu0 0.0
    %768 = vmatpush2.msra.mxu0 0.0
    %769 = vmatprep.subr.mxu0 0.0
    %770 = vmatpush2.msra.mxu0 0.0
    %771 = vmatprep.subr.mxu0 0.0
    %772 = vmatpush2.msra.mxu0 0.0
    %773 = vmatprep.subr.mxu0 0.0
    %774 = vmatpush2.msra.mxu0 0.0
    %775 = vmatprep.subr.mxu0 0.0
    %776 = vmatpush2.msra.mxu0 0.0
    %777 = vmatprep.subr.mxu0 0.0
    %778 = vmatpush2.msra.mxu0 0.0
    %779 = vmatprep.subr.mxu0 0.0
    %780 = vmatpush2.msra.mxu0 0.0
    %781 = vmatprep.subr.mxu0 0.0
    %782 = vmatpush2.msra.mxu0 0.0
    %783 = vmatprep.mubr.f32.mxu0 0.0
    %784 = vmatmul.mubr.f32.gmra.mxu0 %v717
    %v785 = vpop.f32.mrf.mxu0
    %v786 = vadd.f32 %v715, %v785
    %v787 = vpop.f32.mrf.mxu0
    %788 = vdwg.mxu0
    %789 = vst [vmem:[#allocation2] sm:$0xff] %v786
    // Predicated region
    $region22: #{tpu_custom_call.1} parent=1 // pred_check
      _
    $region23: #{tpu_custom_call.1} parent=1 // pred_check_branch
      %791 = sbr.rel (0) target = $region25
    $region24: #{tpu_custom_call.1} parent=1 // pred_region
      %s793 = ssub.s32 128, 128
      %794 = vsyncadd [#allocation3], %s793
      %s796 = sshll.u32 [#allocation2], 4
      %s797 = int_to_ptr.vmem [resolvable:$true] %s796
      %799 = dma.vmem_to_hbm [thread:$0]  %s797, 128, %s5, [#allocation3]
    $region25: #{tpu_custom_call.1} parent=1 // pred_fallthru
      _
    // Predicated region
    $region26: #{tpu_custom_call.1} parent=1 // pred_check
      _
    $region27: #{tpu_custom_call.1} parent=1 // pred_check_branch
      %801 = sbr.rel (0) target = $region29
    $region28: #{tpu_custom_call.1} parent=1 // pred_region
      %802 = dma.done [#allocation3], 128
    $region29: #{tpu_custom_call.1} parent=1 // pred_fallthru
      _
    %803 = vsyncpa [#allocation3], 1

</llo_original>
